<compile_context>
chip_gen: v6e
topology: v6e:2x2x1
jax: 0.10.0
libtpu: 0.0.40
codegen_flags: <defaults>
</compile_context>

<pallas_src>
import jax
import jax.numpy as jnp
from jax.experimental import pallas as pl
from jax.experimental.pallas import tpu as pltpu


# ----------------------------------------------------------------------------
# Fused Pallas kernel: adjacency (z z^T -> sigmoid) + fused two-head MLP
# ----------------------------------------------------------------------------
def _graph_decoder_kernel(z_ref, w1_ref, b1_ref, w2_ref, b2_ref,
                          mlp_ref, adj_ref):
    z = z_ref[...]                                   # (B, N, D) f32, VMEM
    B, N, D = z.shape

    # adj = sigmoid(z @ z^T): batched contraction over the feature axis
    # (no transpose materialized in VMEM).
    logits = jnp.einsum('bnd,bmd->bnm', z, z,
                        preferred_element_type=jnp.float32)
    adj_ref[...] = jax.nn.sigmoid(logits)            # exp/recip on EUP

    # Fused two-head MLP.  w1 = [w1v | w1r] (D, 2H); w2 = blockdiag(w2v, w2r)
    # (2H, 2C); biases concatenated.  Batch folded into the M dimension so the
    # whole MLP path is exactly two MXU matmuls.
    z2 = z.reshape(B * N, D)
    h = jnp.dot(z2, w1_ref[...], preferred_element_type=jnp.float32) + b1_ref[...]
    h = jnp.maximum(h, 0.0)                          # ReLU (VPU)
    out = jnp.dot(h, w2_ref[...], preferred_element_type=jnp.float32) + b2_ref[...]
    mlp_ref[...] = out.reshape(B, N, -1)             # (B, N, 2C) = [x_spv | x_spr]


def graph_decoder_forward(params, z):
    """z: (B, N, D) float32 -> (x_spv (B,N,C), x_spr (B,N,C), adj (B,N,N))."""
    B, N, D = z.shape
    (w1v, b1v), (w2v, b2v) = params['spv']
    (w1r, b1r), (w2r, b2r) = params['spr']
    H = w1v.shape[1]
    C = w2v.shape[1]

    # ---- host-side head fusion: one packed weight/bias slab per layer -------
    w1p = jnp.concatenate([w1v, w1r], axis=1)                       # (D, 2H)
    b1p = jnp.concatenate([b1v, b1r], axis=1)                       # (1, 2H)
    w2p = jnp.zeros((2 * H, 2 * C), dtype=w2v.dtype)
    w2p = w2p.at[:H, :C].set(w2v).at[H:, C:].set(w2r)               # block-diag
    b2p = jnp.concatenate([b2v, b2r], axis=1)                       # (1, 2C)

    flops = (2 * B * N * N * D                     # z @ z^T
             + 2 * (B * N) * D * (2 * H)           # layer 1, both heads
             + 2 * (B * N) * (2 * H) * (2 * C))    # layer 2, both heads
    bytes_accessed = 4 * (z.size + w1p.size + b1p.size + w2p.size + b2p.size
                          + B * N * 2 * C + B * N * N)

    vspec = pl.BlockSpec(memory_space=pltpu.MemorySpace.VMEM)

    mlp_packed, adj = pl.pallas_call(
        _graph_decoder_kernel,
        out_shape=(
            jax.ShapeDtypeStruct((B, N, 2 * C), jnp.float32),   # [x_spv | x_spr]
            jax.ShapeDtypeStruct((B, N, N), jnp.float32),       # sigmoid(adj)
        ),
        in_specs=[vspec, vspec, vspec, vspec, vspec],
        out_specs=(vspec, vspec),
        cost_estimate=pl.CostEstimate(flops=flops,
                                      transcendentals=B * N * N,
                                      bytes_accessed=bytes_accessed),
    )(z, w1p, b1p, w2p, b2p)

    return mlp_packed[..., :C], mlp_packed[..., C:], adj


# ----------------------------------------------------------------------------
# Parameters (deterministic, synthetic) + pure-JAX reference
# ----------------------------------------------------------------------------
def _linear(key, din, dout, scale=0.3):
    kw, kb = jax.random.split(key)
    return (scale * jax.random.normal(kw, (din, dout), jnp.float32),
            scale * jax.random.normal(kb, (1, dout), jnp.float32))


def init_params(key, out_channels, in_channels, hidden=24):
    ks = jax.random.split(key, 4)
    return {
        'spv': [_linear(ks[0], out_channels, hidden),
                _linear(ks[1], hidden, in_channels)],
        'spr': [_linear(ks[2], out_channels, hidden),
                _linear(ks[3], hidden, in_channels)],
    }


def _ref_forward(params, z):
    (w1v, b1v), (w2v, b2v) = params['spv']
    (w1r, b1r), (w2r, b2r) = params['spr']
    adj = jax.nn.sigmoid(jnp.einsum('bnd,bmd->bnm', z, z))
    spv = jnp.maximum(z @ w1v + b1v, 0.0) @ w2v + b2v
    spr = jnp.maximum(z @ w1r + b1r, 0.0) @ w2r + b2r
    return spv, spr, adj


if __name__ == "__main__":
    key = jax.random.PRNGKey(0)
    k_params, k_z = jax.random.split(key)

    B, N = 2, 8                 # batch, number of graph nodes
    out_channels = 32           # feature dim of z (MLP input D)
    in_channels = 16            # MLP output dim C

    params = init_params(k_params, out_channels, in_channels)
    z = jax.random.normal(k_z, (B, N, out_channels), dtype=jnp.float32)

    fwd = jax.jit(graph_decoder_forward)
    x_spv, x_spr, adj = jax.block_until_ready(fwd(params, z))

    assert x_spv.shape == (B, N, in_channels), x_spv.shape
    assert x_spr.shape == (B, N, in_channels), x_spr.shape
    assert adj.shape == (B, N, N), adj.shape

    r_spv, r_spr, r_adj = _ref_forward(params, z)
    assert jnp.allclose(x_spv, r_spv, atol=1e-5, rtol=1e-5)
    assert jnp.allclose(x_spr, r_spr, atol=1e-5, rtol=1e-5)
    assert jnp.allclose(adj, r_adj, atol=1e-5, rtol=1e-5)

    print("KERNEL_OK")
</pallas_src>

<mosaic_0001>
module attributes {stable_mosaic.version = 11 : i64} {
  func.func @_graph_decoder_kernel(%arg0: memref<2x8x32xf32, #tpu.memory_space<vmem>>, %arg1: memref<32x48xf32, #tpu.memory_space<vmem>>, %arg2: memref<1x48xf32, #tpu.memory_space<vmem>>, %arg3: memref<48x32xf32, #tpu.memory_space<vmem>>, %arg4: memref<1x32xf32, #tpu.memory_space<vmem>>, %arg5: memref<2x8x32xf32, #tpu.memory_space<vmem>>, %arg6: memref<2x8x8xf32, #tpu.memory_space<vmem>>) attributes {dimension_semantics = [], scalar_prefetch = 0 : i64, scratch_operands = 0 : i64, tpu.core_type = #tpu.core_type<tc>} {
    %c0 = arith.constant 0 : index
    %c0_0 = arith.constant 0 : index
    %c0_1 = arith.constant 0 : index
    %0 = vector.load %arg0[%c0, %c0_0, %c0_1] : memref<2x8x32xf32, #tpu.memory_space<vmem>>, vector<2x8x32xf32>
    "tpu.trace_start"() <{level = 10 : i32, message = "bnd,bmd->bnm"}> : () -> ()
    %cst = arith.constant dense<0.000000e+00> : vector<2x8x8xf32>
    %1 = tpu.matmul %0, %0, %cst {dimension_numbers = #tpu.dot_dimension_numbers<[2], [2], [1], [1], [0, 0, 0, 1, 1, 1], [0], [0]>} : vector<2x8x32xf32>, vector<2x8x32xf32>, vector<2x8x8xf32> -> vector<2x8x8xf32>
    "tpu.trace_stop"() : () -> ()
    %2 = arith.negf %1 : vector<2x8x8xf32>
    %3 = math.exp %2 : vector<2x8x8xf32>
    %cst_2 = arith.constant 1.000000e+00 : f32
    %4 = vector.broadcast %cst_2 : f32 to vector<2x8x8xf32>
    %5 = arith.addf %4, %3 : vector<2x8x8xf32>
    %6 = arith.divf %4, %5 : vector<2x8x8xf32>
    %c0_3 = arith.constant 0 : index
    %c0_4 = arith.constant 0 : index
    %c0_5 = arith.constant 0 : index
    %7 = vector.load %arg6[%c0_3, %c0_4, %c0_5] : memref<2x8x8xf32, #tpu.memory_space<vmem>>, vector<2x8x8xf32>
    tpu.vector_store %arg6[%c0_3, %c0_4, %c0_5], %6 {strides = array<i32>} : memref<2x8x8xf32, #tpu.memory_space<vmem>>, vector<2x8x8xf32>,
    %8 = vector.shape_cast %0 : vector<2x8x32xf32> to vector<16x32xf32>
    %c0_6 = arith.constant 0 : index
    %c0_7 = arith.constant 0 : index
    %9 = vector.load %arg1[%c0_6, %c0_7] : memref<32x48xf32, #tpu.memory_space<vmem>>, vector<32x48xf32>
    %cst_8 = arith.constant dense<0.000000e+00> : vector<16x48xf32>
    %10 = tpu.matmul %8, %9, %cst_8 {dimension_numbers = #tpu.dot_dimension_numbers<[1], [0], [0], [1], [0, 0, 1, 1], [], []>} : vector<16x32xf32>, vector<32x48xf32>, vector<16x48xf32> -> vector<16x48xf32>
    %c0_9 = arith.constant 0 : index
    %c0_10 = arith.constant 0 : index
    %11 = vector.load %arg2[%c0_9, %c0_10] : memref<1x48xf32, #tpu.memory_space<vmem>>, vector<1x48xf32>
    %12 = vector.broadcast %11 : vector<1x48xf32> to vector<16x48xf32>
    %13 = arith.addf %10, %12 : vector<16x48xf32>
    %cst_11 = arith.constant 0.000000e+00 : f32
    %14 = vector.broadcast %cst_11 : f32 to vector<16x48xf32>
    %15 = arith.maximumf %13, %14 : vector<16x48xf32>
    %c0_12 = arith.constant 0 : index
    %c0_13 = arith.constant 0 : index
    %16 = vector.load %arg3[%c0_12, %c0_13] : memref<48x32xf32, #tpu.memory_space<vmem>>, vector<48x32xf32>
    %cst_14 = arith.constant dense<0.000000e+00> : vector<16x32xf32>
    %17 = tpu.matmul %15, %16, %cst_14 {dimension_numbers = #tpu.dot_dimension_numbers<[1], [0], [0], [1], [0, 0, 1, 1], [], []>} : vector<16x48xf32>, vector<48x32xf32>, vector<16x32xf32> -> vector<16x32xf32>
    %c0_15 = arith.constant 0 : index
    %c0_16 = arith.constant 0 : index
    %18 = vector.load %arg4[%c0_15, %c0_16] : memref<1x32xf32, #tpu.memory_space<vmem>>, vector<1x32xf32>
    %19 = vector.broadcast %18 : vector<1x32xf32> to vector<16x32xf32>
    %20 = arith.addf %17, %19 : vector<16x32xf32>
    %21 = vector.shape_cast %20 : vector<16x32xf32> to vector<2x8x32xf32>
    %c0_17 = arith.constant 0 : index
    %c0_18 = arith.constant 0 : index
    %c0_19 = arith.constant 0 : index
    %22 = vector.load %arg5[%c0_17, %c0_18, %c0_19] : memref<2x8x32xf32, #tpu.memory_space<vmem>>, vector<2x8x32xf32>
    tpu.vector_store %arg5[%c0_17, %c0_18, %c0_19], %21 {strides = array<i32>} : memref<2x8x32xf32, #tpu.memory_space<vmem>>, vector<2x8x32xf32>,
    return
  }
}

</mosaic_0001>

<llo_original>
// kernel: graph_decoder_forward.1
$region0: #{graph_decoder_forward.1}
  #allocation0 [shape = 'u32[]', space=smem, size = 0x4, offset = 0x4, fixed_abs, tag = 'smem constant byte address 0x4 - core index']
  #allocation1 [shape = 'u32[144,128]{1,0:T(1,128)}', space=vmem, size = 0x12000, scoped, tag = 'internal scratch']
  %s0 = inlined_call_operand.vmem [shape: f32[2,8,32], index: 0, kind: input, shape index: {}]
  %s1 = inlined_call_operand.vmem [shape: f32[32,48], index: 1, kind: input, shape index: {}]
  %s2 = inlined_call_operand.vmem [shape: f32[1,48], index: 2, kind: input, shape index: {}]
  %s3 = inlined_call_operand.vmem [shape: f32[48,32], index: 3, kind: input, shape index: {}]
  %s4 = inlined_call_operand.vmem [shape: f32[1,32], index: 4, kind: input, shape index: {}]
  %s5 = inlined_call_operand.vmem [shape: f32[2,8,32], index: 5, kind: output, shape index: {0}]
  %s6 = inlined_call_operand.hbm [shape: f32[2,8,8], index: 6, kind: output, shape index: {1}]
  %7 = xla_tuple %s5, %s6
  %s8 = sld [smem:[#allocation0]]
  $region38: #{graph_decoder_forward.1} parent=0
    _
  %s10 = ssub.s32 1, %s8
  %s11 = scalar_select 0, %s10, %s8
  $region1: #{graph_decoder_forward.1} parent=0
    #allocation2 [shape = 'u8[8192]{0}', space=vmem, size = 0x2000, scoped, tag = 'output window, operand 1, single buffered']
    #allocation3 [shape = 's32[1]{0}', space=sflag, size = 0x4, scoped, tag = 'scoped memory for graph_decoder_forward.1']
    %12 = vsyncpa [#allocation3], 0
    // Predicated region
    $region2: #{graph_decoder_forward.1} parent=1 // pred_check
      _
    $region3: #{graph_decoder_forward.1} parent=1 // pred_check_branch
      %14 = sbr.rel (0) target = $region5
    $region4: #{graph_decoder_forward.1} parent=1 // pred_region
      _
    $region5: #{graph_decoder_forward.1} parent=1 // pred_fallthru
      _
    // Predicated region
    $region6: #{graph_decoder_forward.1} parent=1 // pred_check
      _
    $region7: #{graph_decoder_forward.1} parent=1 // pred_check_branch
      %16 = sbr.rel (0) target = $region9
    $region8: #{graph_decoder_forward.1} parent=1 // pred_region
      _
    $region9: #{graph_decoder_forward.1} parent=1 // pred_fallthru
      _
    // Predicated region
    $region10: #{graph_decoder_forward.1} parent=1 // pred_check
      _
    $region11: #{graph_decoder_forward.1} parent=1 // pred_check_branch
      %18 = sbr.rel (0) target = $region13
    $region12: #{graph_decoder_forward.1} parent=1 // pred_region
      _
    $region13: #{graph_decoder_forward.1} parent=1 // pred_fallthru
      _
    // Predicated region
    $region14: #{graph_decoder_forward.1} parent=1 // pred_check
      _
    $region15: #{graph_decoder_forward.1} parent=1 // pred_check_branch
      %20 = sbr.rel (0) target = $region17
    $region16: #{graph_decoder_forward.1} parent=1 // pred_region
      _
    $region17: #{graph_decoder_forward.1} parent=1 // pred_fallthru
      _
    // Predicated region
    $region18: #{graph_decoder_forward.1} parent=1 // pred_check
      _
    $region19: #{graph_decoder_forward.1} parent=1 // pred_check_branch
      %22 = sbr.rel (0) target = $region21
    $region20: #{graph_decoder_forward.1} parent=1 // pred_region
      _
    $region21: #{graph_decoder_forward.1} parent=1 // pred_fallthru
      _
    %v23 = vld [vmem:[%s0] sm:$0xff]
    %v24 = vld [vmem:[%s0 + $0x8] sm:$0xff]
    %vm25 = vcmask 261120
    %v27 = vsel %vm25, %v23, 0
    %29 = vmatprep.subr.mxu0 0.0
    %30 = vmatpush1.xpose.msra.mxu0 0.0
    %31 = vmatprep.subr.mxu0 0.0
    %32 = vmatpush1.xpose.msra.mxu0 0.0
    %33 = vmatprep.subr.mxu0 0.0
    %34 = vmatpush1.xpose.msra.mxu0 0.0
    %35 = vmatprep.subr.mxu0 0.0
    %36 = vmatpush1.xpose.msra.mxu0 0.0
    %37 = vmatprep.subr.mxu0 0.0
    %38 = vmatpush1.xpose.msra.mxu0 0.0
    %39 = vmatprep.subr.mxu0 0.0
    %40 = vmatpush1.xpose.msra.mxu0 0.0
    %41 = vmatprep.subr.mxu0 0.0
    %42 = vmatpush1.xpose.msra.mxu0 0.0
    %43 = vmatprep.subr.mxu0 0.0
    %44 = vmatpush1.xpose.msra.mxu0 0.0
    %45 = vmatprep.subr.mxu0 0.0
    %46 = vmatpush1.xpose.msra.mxu0 0.0
    %47 = vmatprep.subr.mxu0 0.0
    %48 = vmatpush1.xpose.msra.mxu0 0.0
    %49 = vmatprep.subr.mxu0 0.0
    %50 = vmatpush1.xpose.msra.mxu0 0.0
    %51 = vmatprep.subr.mxu0 0.0
    %52 = vmatpush1.xpose.msra.mxu0 0.0
    %53 = vmatprep.subr.mxu0 0.0
    %54 = vmatpush1.xpose.msra.mxu0 0.0
    %55 = vmatprep.subr.mxu0 0.0
    %56 = vmatpush1.xpose.msra.mxu0 0.0
    %57 = vmatprep.subr.mxu0 0.0
    %58 = vmatpush1.xpose.msra.mxu0 0.0
    %59 = vmatprep.subr.mxu0 0.0
    %60 = vmatpush1.xpose.msra.mxu0 %v27
    %61 = vmatprep.subr.mxu0 0.0
    %62 = vmatpush2.xpose.msra.mxu0 0.0
    %63 = vmatprep.subr.mxu0 0.0
    %64 = vmatpush2.xpose.msra.mxu0 0.0
    %65 = vmatprep.subr.mxu0 0.0
    %66 = vmatpush2.xpose.msra.mxu0 0.0
    %67 = vmatprep.subr.mxu0 0.0
    %68 = vmatpush2.xpose.msra.mxu0 0.0
    %69 = vmatprep.subr.mxu0 0.0
    %70 = vmatpush2.xpose.msra.mxu0 0.0
    %71 = vmatprep.subr.mxu0 0.0
    %72 = vmatpush2.xpose.msra.mxu0 0.0
    %73 = vmatprep.subr.mxu0 0.0
    %74 = vmatpush2.xpose.msra.mxu0 0.0
    %75 = vmatprep.subr.mxu0 0.0
    %76 = vmatpush2.xpose.msra.mxu0 0.0
    %77 = vmatprep.subr.mxu0 0.0
    %78 = vmatpush2.xpose.msra.mxu0 0.0
    %79 = vmatprep.subr.mxu0 0.0
    %80 = vmatpush2.xpose.msra.mxu0 0.0
    %81 = vmatprep.subr.mxu0 0.0
    %82 = vmatpush2.xpose.msra.mxu0 0.0
    %83 = vmatprep.subr.mxu0 0.0
    %84 = vmatpush2.xpose.msra.mxu0 0.0
    %85 = vmatprep.subr.mxu0 0.0
    %86 = vmatpush2.xpose.msra.mxu0 0.0
    %87 = vmatprep.subr.mxu0 0.0
    %88 = vmatpush2.xpose.msra.mxu0 0.0
    %89 = vmatprep.subr.mxu0 0.0
    %90 = vmatpush2.xpose.msra.mxu0 0.0
    %91 = vmatprep.subr.mxu0 0.0
    %92 = vmatpush2.xpose.msra.mxu0 0.0
    %93 = vmatprep.mubr.f32.mxu0 0.0
    %94 = vmatmul.mubr.f32.gmra.mxu0 %v27
    %v95 = vpop.f32.mrf.mxu0
    %v96 = vadd.f32 0.0, %v95
    %v97 = vpop.f32.mrf.mxu0
    %98 = vdwg.mxu0
    %v100 = vsel %vm25, %v24, 0
    %102 = vmatprep.subr.mxu0 0.0
    %103 = vmatpush1.xpose.msra.mxu0 0.0
    %104 = vmatprep.subr.mxu0 0.0
    %105 = vmatpush1.xpose.msra.mxu0 0.0
    %106 = vmatprep.subr.mxu0 0.0
    %107 = vmatpush1.xpose.msra.mxu0 0.0
    %108 = vmatprep.subr.mxu0 0.0
    %109 = vmatpush1.xpose.msra.mxu0 0.0
    %110 = vmatprep.subr.mxu0 0.0
    %111 = vmatpush1.xpose.msra.mxu0 0.0
    %112 = vmatprep.subr.mxu0 0.0
    %113 = vmatpush1.xpose.msra.mxu0 0.0
    %114 = vmatprep.subr.mxu0 0.0
    %115 = vmatpush1.xpose.msra.mxu0 0.0
    %116 = vmatprep.subr.mxu0 0.0
    %117 = vmatpush1.xpose.msra.mxu0 0.0
    %118 = vmatprep.subr.mxu0 0.0
    %119 = vmatpush1.xpose.msra.mxu0 0.0
    %120 = vmatprep.subr.mxu0 0.0
    %121 = vmatpush1.xpose.msra.mxu0 0.0
    %122 = vmatprep.subr.mxu0 0.0
    %123 = vmatpush1.xpose.msra.mxu0 0.0
    %124 = vmatprep.subr.mxu0 0.0
    %125 = vmatpush1.xpose.msra.mxu0 0.0
    %126 = vmatprep.subr.mxu0 0.0
    %127 = vmatpush1.xpose.msra.mxu0 0.0
    %128 = vmatprep.subr.mxu0 0.0
    %129 = vmatpush1.xpose.msra.mxu0 0.0
    %130 = vmatprep.subr.mxu0 0.0
    %131 = vmatpush1.xpose.msra.mxu0 0.0
    %132 = vmatprep.subr.mxu0 0.0
    %133 = vmatpush1.xpose.msra.mxu0 %v100
    %134 = vmatprep.subr.mxu0 0.0
    %135 = vmatpush2.xpose.msra.mxu0 0.0
    %136 = vmatprep.subr.mxu0 0.0
    %137 = vmatpush2.xpose.msra.mxu0 0.0
    %138 = vmatprep.subr.mxu0 0.0
    %139 = vmatpush2.xpose.msra.mxu0 0.0
    %140 = vmatprep.subr.mxu0 0.0
    %141 = vmatpush2.xpose.msra.mxu0 0.0
    %142 = vmatprep.subr.mxu0 0.0
    %143 = vmatpush2.xpose.msra.mxu0 0.0
    %144 = vmatprep.subr.mxu0 0.0
    %145 = vmatpush2.xpose.msra.mxu0 0.0
    %146 = vmatprep.subr.mxu0 0.0
    %147 = vmatpush2.xpose.msra.mxu0 0.0
    %148 = vmatprep.subr.mxu0 0.0
    %149 = vmatpush2.xpose.msra.mxu0 0.0
    %150 = vmatprep.subr.mxu0 0.0
    %151 = vmatpush2.xpose.msra.mxu0 0.0
    %152 = vmatprep.subr.mxu0 0.0
    %153 = vmatpush2.xpose.msra.mxu0 0.0
    %154 = vmatprep.subr.mxu0 0.0
    %155 = vmatpush2.xpose.msra.mxu0 0.0
    %156 = vmatprep.subr.mxu0 0.0
    %157 = vmatpush2.xpose.msra.mxu0 0.0
    %158 = vmatprep.subr.mxu0 0.0
    %159 = vmatpush2.xpose.msra.mxu0 0.0
    %160 = vmatprep.subr.mxu0 0.0
    %161 = vmatpush2.xpose.msra.mxu0 0.0
    %162 = vmatprep.subr.mxu0 0.0
    %163 = vmatpush2.xpose.msra.mxu0 0.0
    %164 = vmatprep.subr.mxu0 0.0
    %165 = vmatpush2.xpose.msra.mxu0 0.0
    %166 = vmatprep.mubr.f32.mxu0 0.0
    %167 = vmatmul.mubr.f32.gmra.mxu0 %v100
    %v168 = vpop.f32.mrf.mxu0
    %v169 = vadd.f32 0.0, %v168
    %v170 = vpop.f32.mrf.mxu0
    %171 = vdwg.mxu0
    %v172 = vxor.u32 %v96, 2147483648
    %v173 = vxor.u32 %v169, 2147483648
    %v174 = vmul.f32 %v172, 1.442695
    %v175 = vpow.pop %v174
    %v176 = vmul.f32 %v173, 1.442695
    %v177 = vpow.pop %v176
    %v178 = vadd.f32 %v175, 1.0
    %v179 = vadd.f32 %v177, 1.0
    %v180 = vrcp.pop %v178
    %v181 = vmul.f32 1.0, %v180
    %v182 = vrcp.pop %v179
    %v183 = vmul.f32 1.0, %v182
    %vm184 = vcmask 64512
    %185 = vst.msk [vmem:[#allocation2] sm:$0xff] %vm184, %v181
    %186 = vst.msk [vmem:[#allocation2 + $0x8] sm:$0xff] %vm184, %v183
    %v187 = vld [vmem:[%s1] sm:$0xff]
    %v188 = vld [vmem:[%s1 + $0x8] sm:$0xff]
    %v189 = vld [vmem:[%s1 + $0x10] sm:$0xff]
    %v190 = vld [vmem:[%s1 + $0x18] sm:$0xff]
    %v191 = vld [vmem:[%s2] sm:$0x1]
    %v193 = vlaneseq
    %v194 = vshrl.u32 %v193, 7
    %v195 = vsub.s32 0, %v194
    %v196 = vrot.slane %v191, %v195
    %198 = vmatprep.subr.mxu0 0.0
    %199 = vmatpush1.msra.mxu0 0.0
    %200 = vmatprep.subr.mxu0 0.0
    %201 = vmatpush1.msra.mxu0 0.0
    %202 = vmatprep.subr.mxu0 0.0
    %203 = vmatpush1.msra.mxu0 0.0
    %204 = vmatprep.subr.mxu0 0.0
    %205 = vmatpush1.msra.mxu0 0.0
    %206 = vmatprep.subr.mxu0 0.0
    %207 = vmatpush1.msra.mxu0 0.0
    %208 = vmatprep.subr.mxu0 0.0
    %209 = vmatpush1.msra.mxu0 0.0
    %210 = vmatprep.subr.mxu0 0.0
    %211 = vmatpush1.msra.mxu0 0.0
    %212 = vmatprep.subr.mxu0 0.0
    %213 = vmatpush1.msra.mxu0 0.0
    %214 = vmatprep.subr.mxu0 0.0
    %215 = vmatpush1.msra.mxu0 0.0
    %216 = vmatprep.subr.mxu0 0.0
    %217 = vmatpush1.msra.mxu0 0.0
    %218 = vmatprep.subr.mxu0 0.0
    %219 = vmatpush1.msra.mxu0 0.0
    %220 = vmatprep.subr.mxu0 0.0
    %221 = vmatpush1.msra.mxu0 0.0
    %222 = vmatprep.subr.mxu0 0.0
    %223 = vmatpush1.msra.mxu0 %v190
    %224 = vmatprep.subr.mxu0 0.0
    %225 = vmatpush1.msra.mxu0 %v189
    %226 = vmatprep.subr.mxu0 0.0
    %227 = vmatpush1.msra.mxu0 %v188
    %228 = vmatprep.subr.mxu0 0.0
    %229 = vmatpush1.msra.mxu0 %v187
    %230 = vmatprep.subr.mxu0 0.0
    %231 = vmatpush2.msra.mxu0 0.0
    %232 = vmatprep.subr.mxu0 0.0
    %233 = vmatpush2.msra.mxu0 0.0
    %234 = vmatprep.subr.mxu0 0.0
    %235 = vmatpush2.msra.mxu0 0.0
    %236 = vmatprep.subr.mxu0 0.0
    %237 = vmatpush2.msra.mxu0 0.0
    %238 = vmatprep.subr.mxu0 0.0
    %239 = vmatpush2.msra.mxu0 0.0
    %240 = vmatprep.subr.mxu0 0.0
    %241 = vmatpush2.msra.mxu0 0.0
    %242 = vmatprep.subr.mxu0 0.0
    %243 = vmatpush2.msra.mxu0 0.0
    %244 = vmatprep.subr.mxu0 0.0
    %245 = vmatpush2.msra.mxu0 0.0
    %246 = vmatprep.subr.mxu0 0.0
    %247 = vmatpush2.msra.mxu0 0.0
    %248 = vmatprep.subr.mxu0 0.0
    %249 = vmatpush2.msra.mxu0 0.0
    %250 = vmatprep.subr.mxu0 0.0
    %251 = vmatpush2.msra.mxu0 0.0
    %252 = vmatprep.subr.mxu0 0.0
    %253 = vmatpush2.msra.mxu0 0.0
    %254 = vmatprep.subr.mxu0 0.0
    %255 = vmatpush2.msra.mxu0 0.0
    %256 = vmatprep.subr.mxu0 0.0
    %257 = vmatpush2.msra.mxu0 0.0
    %258 = vmatprep.subr.mxu0 0.0
    %259 = vmatpush2.msra.mxu0 0.0
    %260 = vmatprep.subr.mxu0 0.0
    %261 = vmatpush2.msra.mxu0 0.0
    %262 = vmatprep.mubr.f32.mxu0 0.0
    %263 = vmatmul.mubr.f32.gmra.mxu0 %v27
    %v264 = vpop.f32.mrf.mxu0
    %v265 = vadd.f32 %v196, %v264
    %v266 = vpop.f32.mrf.mxu0
    %267 = vmatprep.mubr.f32.mxu0 0.0
    %268 = vmatmul.mubr.f32.gmra.mxu0 %v100
    %v269 = vpop.f32.mrf.mxu0
    %v270 = vadd.f32 %v196, %v269
    %v271 = vpop.f32.mrf.mxu0
    %272 = vdwg.mxu0
    %v273 = vmax.f32 %v265, 0.0
    %v274 = vmax.f32 %v270, 0.0
    %v275 = vld [vmem:[%s3] sm:$0xff]
    %v276 = vld [vmem:[%s3 + $0x8] sm:$0xff]
    %v277 = vld [vmem:[%s3 + $0x10] sm:$0xff]
    %v278 = vld [vmem:[%s3 + $0x18] sm:$0xff]
    %v279 = vld [vmem:[%s3 + $0x20] sm:$0xff]
    %v280 = vld [vmem:[%s3 + $0x28] sm:$0xff]
    %v281 = vld [vmem:[%s4] sm:$0x1]
    %v283 = vlaneseq
    %v284 = vshrl.u32 %v283, 7
    %v285 = vsub.s32 0, %v284
    %v286 = vrot.slane %v281, %v285
    %vm288 = vcmask 392192
    %v290 = vsel %vm288, %v273, 0
    %v293 = vsel %vm288, %v274, 0
    %295 = vmatprep.subr.mxu0 0.0
    %296 = vmatpush1.msra.mxu0 0.0
    %297 = vmatprep.subr.mxu0 0.0
    %298 = vmatpush1.msra.mxu0 0.0
    %299 = vmatprep.subr.mxu0 0.0
    %300 = vmatpush1.msra.mxu0 0.0
    %301 = vmatprep.subr.mxu0 0.0
    %302 = vmatpush1.msra.mxu0 0.0
    %303 = vmatprep.subr.mxu0 0.0
    %304 = vmatpush1.msra.mxu0 0.0
    %305 = vmatprep.subr.mxu0 0.0
    %306 = vmatpush1.msra.mxu0 0.0
    %307 = vmatprep.subr.mxu0 0.0
    %308 = vmatpush1.msra.mxu0 0.0
    %309 = vmatprep.subr.mxu0 0.0
    %310 = vmatpush1.msra.mxu0 0.0
    %311 = vmatprep.subr.mxu0 0.0
    %312 = vmatpush1.msra.mxu0 0.0
    %313 = vmatprep.subr.mxu0 0.0
    %314 = vmatpush1.msra.mxu0 0.0
    %315 = vmatprep.subr.mxu0 0.0
    %316 = vmatpush1.msra.mxu0 %v280
    %317 = vmatprep.subr.mxu0 0.0
    %318 = vmatpush1.msra.mxu0 %v279
    %319 = vmatprep.subr.mxu0 0.0
    %320 = vmatpush1.msra.mxu0 %v278
    %321 = vmatprep.subr.mxu0 0.0
    %322 = vmatpush1.msra.mxu0 %v277
    %323 = vmatprep.subr.mxu0 0.0
    %324 = vmatpush1.msra.mxu0 %v276
    %325 = vmatprep.subr.mxu0 0.0
    %326 = vmatpush1.msra.mxu0 %v275
    %327 = vmatprep.subr.mxu0 0.0
    %328 = vmatpush2.msra.mxu0 0.0
    %329 = vmatprep.subr.mxu0 0.0
    %330 = vmatpush2.msra.mxu0 0.0
    %331 = vmatprep.subr.mxu0 0.0
    %332 = vmatpush2.msra.mxu0 0.0
    %333 = vmatprep.subr.mxu0 0.0
    %334 = vmatpush2.msra.mxu0 0.0
    %335 = vmatprep.subr.mxu0 0.0
    %336 = vmatpush2.msra.mxu0 0.0
    %337 = vmatprep.subr.mxu0 0.0
    %338 = vmatpush2.msra.mxu0 0.0
    %339 = vmatprep.subr.mxu0 0.0
    %340 = vmatpush2.msra.mxu0 0.0
    %341 = vmatprep.subr.mxu0 0.0
    %342 = vmatpush2.msra.mxu0 0.0
    %343 = vmatprep.subr.mxu0 0.0
    %344 = vmatpush2.msra.mxu0 0.0
    %345 = vmatprep.subr.mxu0 0.0
    %346 = vmatpush2.msra.mxu0 0.0
    %347 = vmatprep.subr.mxu0 0.0
    %348 = vmatpush2.msra.mxu0 0.0
    %349 = vmatprep.subr.mxu0 0.0
    %350 = vmatpush2.msra.mxu0 0.0
    %351 = vmatprep.subr.mxu0 0.0
    %352 = vmatpush2.msra.mxu0 0.0
    %353 = vmatprep.subr.mxu0 0.0
    %354 = vmatpush2.msra.mxu0 0.0
    %355 = vmatprep.subr.mxu0 0.0
    %356 = vmatpush2.msra.mxu0 0.0
    %357 = vmatprep.subr.mxu0 0.0
    %358 = vmatpush2.msra.mxu0 0.0
    %359 = vmatprep.mubr.f32.mxu0 0.0
    %360 = vmatmul.mubr.f32.gmra.mxu0 %v290
    %v361 = vpop.f32.mrf.mxu0
    %v362 = vadd.f32 %v286, %v361
    %v363 = vpop.f32.mrf.mxu0
    %364 = vmatprep.mubr.f32.mxu0 0.0
    %365 = vmatmul.mubr.f32.gmra.mxu0 %v293
    %v366 = vpop.f32.mrf.mxu0
    %v367 = vadd.f32 %v286, %v366
    %v368 = vpop.f32.mrf.mxu0
    %369 = vdwg.mxu0
    %370 = vst.msk [vmem:[%s5] sm:$0xff] %vm25, %v362
    %371 = vst.msk [vmem:[%s5 + $0x8] sm:$0xff] %vm25, %v367
    // Predicated region
    $region22: #{graph_decoder_forward.1} parent=1 // pred_check
      _
    $region23: #{graph_decoder_forward.1} parent=1 // pred_check_branch
      %373 = sbr.rel (0) target = $region25
    $region24: #{graph_decoder_forward.1} parent=1 // pred_region
      _
    $region25: #{graph_decoder_forward.1} parent=1 // pred_fallthru
      _
    // Predicated region
    $region26: #{graph_decoder_forward.1} parent=1 // pred_check
      _
    $region27: #{graph_decoder_forward.1} parent=1 // pred_check_branch
      %375 = sbr.rel (0) target = $region29
    $region28: #{graph_decoder_forward.1} parent=1 // pred_region
      %s377 = ssub.s32 256, 256
      %378 = vsyncadd [#allocation3], %s377
      %s379 = sshll.u32 [#allocation2], 4
      %s380 = int_to_ptr.vmem [resolvable:$true] %s379
      %385 = dma.vmem_to_hbm [thread:$0]  %s380, 256, %s6, [#allocation3], 128, 128, 8
    $region29: #{graph_decoder_forward.1} parent=1 // pred_fallthru
      _
    // Predicated region
    $region30: #{graph_decoder_forward.1} parent=1 // pred_check
      _
    $region31: #{graph_decoder_forward.1} parent=1 // pred_check_branch
      %387 = sbr.rel (0) target = $region33
    $region32: #{graph_decoder_forward.1} parent=1 // pred_region
      _
    $region33: #{graph_decoder_forward.1} parent=1 // pred_fallthru
      _
    // Predicated region
    $region34: #{graph_decoder_forward.1} parent=1 // pred_check
      _
    $region35: #{graph_decoder_forward.1} parent=1 // pred_check_branch
      %389 = sbr.rel (0) target = $region37
    $region36: #{graph_decoder_forward.1} parent=1 // pred_region
      %390 = dma.done [#allocation3], 256
    $region37: #{graph_decoder_forward.1} parent=1 // pred_fallthru
      _
    %391 = vsyncpa [#allocation3], 1

</llo_original>
